<compile_context>
chip_gen: v5e
topology: v5e:2x2
jax: 0.10.0
libtpu: 0.0.40
codegen_flags: <defaults>
</compile_context>

<pallas_src>
import jax
import jax.numpy as jnp
from jax.experimental import pallas as pl
from jax.experimental.pallas import tpu as pltpu

LN_EPS = 1e-5


def _bottleneck_kernel(x_ref, w_ref, b_ref, o_ref):
    """Fused LayerNorm -> Linear -> residual on a channel-major (C, TN) tile.

    x_ref : (C, TN)  token tile (pre-norm input, also the residual)
    w_ref : (C, C)   folded weight  W' = W * gamma  (used as-is: y = W' @ x_hat)
    b_ref : (C, 1)   folded bias    b' = W @ beta + fc_bias
    o_ref : (C, TN)  output tile (TN is a multiple of 128 -> unmasked stores)
    """
    x = x_ref[...].astype(jnp.float32)
    inv_c = 1.0 / x_ref.shape[0]

    # LayerNorm statistics over channels (sublane axis), single pass.
    s1 = jnp.sum(x, axis=0, keepdims=True)       # (1, TN)
    s2 = jnp.sum(x * x, axis=0, keepdims=True)   # (1, TN)
    mean = s1 * inv_c
    # Clamp: E[x^2] - E[x]^2 can cancel slightly negative for large activations.
    var = jnp.maximum(s2 * inv_c - mean * mean, 0.0)
    x_hat = (x - mean) * jax.lax.rsqrt(var + LN_EPS)

    # Folded Linear on the MXU (LN affine already baked into w_ref / b_ref).
    # x_hat cast to the weight dtype so bf16 weights give bf16 MXU operands;
    # accumulation stays f32 via preferred_element_type.
    y = jnp.dot(w_ref[...], x_hat.astype(w_ref.dtype),
                preferred_element_type=jnp.float32)

    # Bias + residual add (pre-norm x == identity in NCHW layout).
    o_ref[...] = (y + b_ref[...].astype(jnp.float32) + x).astype(o_ref.dtype)


def _pick_tile_n(hw_pad, batch, c, x_itemsize, w_itemsize,
                 *, max_tn=4096, min_steps=8, vmem_budget=40 << 20):
    """Largest 128-multiple token tile that (a) divides hw_pad, (b) fits the
    VMEM budget (double-buffered in/out tiles + single-buffered W + bias), and
    (c) still leaves >= min_steps grid steps for megacore, when possible."""
    cands = [t for t in range(128, min(hw_pad, max_tn) + 1, 128)
             if hw_pad % t == 0]
    if not cands:
        return hw_pad  # unreachable once hw_pad is padded to a 128 multiple

    def vmem_bytes(t):
        return 2 * 2 * c * t * x_itemsize + c * c * w_itemsize + c * 128 * 4

    fitting = [t for t in cands if vmem_bytes(t) <= vmem_budget] or [cands[0]]
    for t in sorted(fitting, reverse=True):
        if batch * (hw_pad // t) >= min_steps:
            return t
    # Not enough work for min_steps at any fitting tile: maximize step count.
    return fitting[0]


def bottleneck_block(x, ln_weight, ln_bias, fc_weight, fc_bias,
                     *, tile_n=None, matmul_dtype="auto"):
    """x: (B, C, H, W). Returns (B, C, H, W).

    matmul_dtype: dtype for the (folded) Linear weight fed to the MXU.
      "auto" -> bfloat16 for C >= 256 (v6e/v7x MXU peak, halves W traffic),
      None   -> keep f32, or pass an explicit dtype.
    """
    B, C, H, W = x.shape
    HW = H * W
    f32 = jnp.float32

    # Fold the LN affine and Linear bias into the weight/bias (exact up to FP
    # reassociation):  fc(LN(x)) = (W * gamma) @ x_hat + (W @ beta + b).
    w_folded = fc_weight.astype(f32) * ln_weight.astype(f32)[None, :]
    b_folded = fc_weight.astype(f32) @ ln_bias.astype(f32) + fc_bias.astype(f32)

    if matmul_dtype == "auto":
        matmul_dtype = jnp.bfloat16 if C >= 256 else None
    if matmul_dtype is not None:
        w_folded = w_folded.astype(matmul_dtype)
    b2 = b_folded.reshape(C, 1)

    # NCHW-native (B, C, HW) view; pad tokens to a multiple of 128 so output
    # stores are lane-dense (padded columns compute garbage and are sliced off;
    # LN is per-token so they never contaminate real tokens).
    x3 = x.reshape(B, C, HW)
    hw_pad = ((HW + 127) // 128) * 128
    if hw_pad != HW:
        x3 = jnp.pad(x3, ((0, 0), (0, 0), (0, hw_pad - HW)))

    x_isz = x.dtype.itemsize
    w_isz = w_folded.dtype.itemsize
    if tile_n is not None:
        tn = tile_n
    else:
        tn = _pick_tile_n(hw_pad, B, C, x_isz, w_isz)
    assert hw_pad % tn == 0, "tile_n must divide the padded token count"

    # Explicit VMEM budget: 2x double-buffered (in + out) tiles, single-buffered
    # folded weight + bias, 1.5x headroom; capped below per-TC physical VMEM
    # (64 MiB on v7x).
    vmem_needed = 2 * 2 * C * tn * x_isz + C * C * w_isz + C * 128 * 4
    vmem_limit = int(min(max(vmem_needed * 3 // 2 + (2 << 20), 32 << 20),
                         60 << 20))

    cost = pl.CostEstimate(
        flops=2 * B * hw_pad * C * C + 8 * B * C * hw_pad,
        transcendentals=B * hw_pad,
        bytes_accessed=(2 * B * C * hw_pad * x_isz + C * C * w_isz + C * 4),
    )

    out3 = pl.pallas_call(
        _bottleneck_kernel,
        out_shape=jax.ShapeDtypeStruct((B, C, hw_pad), x.dtype),
        grid_spec=pltpu.PrefetchScalarGridSpec(
            num_scalar_prefetch=0,
            grid=(B, hw_pad // tn),
            in_specs=[
                # Token tile: varies with the grid -> default double-buffering.
                pl.BlockSpec((None, C, tn), lambda b, j: (b, 0, j)),
                # Grid-invariant operands: single-buffer to free VMEM.
                pl.BlockSpec((C, C), lambda b, j: (0, 0),
                             pipeline_mode=pl.Buffered(buffer_count=1)),
                pl.BlockSpec((C, 1), lambda b, j: (0, 0),
                             pipeline_mode=pl.Buffered(buffer_count=1)),
            ],
            out_specs=pl.BlockSpec((None, C, tn), lambda b, j: (b, 0, j)),
        ),
        compiler_params=pltpu.CompilerParams(
            dimension_semantics=("parallel", "parallel"),
            vmem_limit_bytes=vmem_limit),
        cost_estimate=cost,
        # TODO(synk): for C large enough that W alone dominates VMEM (C >~ 3.5K
        # on v7x), add an innermost "arbitrary" contraction axis streaming W in
        # (C, tk) blocks with an f32 (C, tn) accumulator scratch.
    )(x3, w_folded, b2)

    if hw_pad != HW:
        out3 = out3[..., :HW]
    return out3.reshape(B, C, H, W)


def _reference(x, ln_weight, ln_bias, fc_weight, fc_bias):
    B, C, H, W = x.shape
    t = jnp.transpose(x, (0, 2, 3, 1)).reshape(B, H * W, C)
    mean = jnp.mean(t, axis=-1, keepdims=True)
    var = jnp.mean((t - mean) ** 2, axis=-1, keepdims=True)
    tn = (t - mean) / jnp.sqrt(var + LN_EPS) * ln_weight + ln_bias
    y = tn @ fc_weight.T + fc_bias
    y = jnp.transpose(y.reshape(B, H, W, C), (0, 3, 1, 2))
    return y + x


if __name__ == "__main__":
    key = jax.random.PRNGKey(0)
    B, C, H, W = 2, 32, 16, 16   # dim = C = 32, HW = 256

    k_x, k_w = jax.random.split(key)
    x = jax.random.normal(k_x, (B, C, H, W), dtype=jnp.float32)

    # Deterministic parameter init matching _init_weights:
    #   Linear: trunc_normal_(std=0.02), bias = 0
    #   LayerNorm: weight = 1, bias = 0
    fc_weight = (jax.random.truncated_normal(k_w, -2.0, 2.0, (C, C),
                                             dtype=jnp.float32) * 0.02)
    fc_bias = jnp.zeros((C,), dtype=jnp.float32)
    ln_weight = jnp.ones((C,), dtype=jnp.float32)
    ln_bias = jnp.zeros((C,), dtype=jnp.float32)

    out = bottleneck_block(x, ln_weight, ln_bias, fc_weight, fc_bias)
    out = jax.block_until_ready(out)

    ref = _reference(x, ln_weight, ln_bias, fc_weight, fc_bias)
    assert out.shape == (B, C, H, W)
    assert jnp.allclose(out, ref, atol=1e-4, rtol=1e-4), "mismatch vs reference"
    print("KERNEL_OK")
</pallas_src>

<mosaic_0001>
module attributes {stable_mosaic.version = 11 : i64} {
  func.func @_bottleneck_kernel(%arg0: i32, %arg1: i32, %arg2: memref<1x32x128xf32, #tpu.memory_space<vmem>>, %arg3: memref<32x32xf32, #tpu.memory_space<vmem>>, %arg4: memref<32x1xf32, #tpu.memory_space<vmem>>, %arg5: memref<1x32x128xf32, #tpu.memory_space<vmem>>) attributes {dimension_semantics = [#tpu.dimension_semantics<parallel>, #tpu.dimension_semantics<parallel>], iteration_bounds = array<i64: 2, 2>, scalar_prefetch = 0 : i64, scratch_operands = 0 : i64, tpu.core_type = #tpu.core_type<tc>, window_params = [{transform_indices = @transform_0, window_bounds = array<i64: 1, 32, 128>}, {pipeline_mode = #tpu.pipeline_mode<synchronous>, transform_indices = @transform_1, window_bounds = array<i64: 32, 32>}, {pipeline_mode = #tpu.pipeline_mode<synchronous>, transform_indices = @transform_2, window_bounds = array<i64: 32, 1>}, {transform_indices = @transform_3, window_bounds = array<i64: 1, 32, 128>}]} {
    %c0 = arith.constant 0 : index
    %c0_0 = arith.constant 0 : index
    %c0_1 = arith.constant 0 : index
    %0 = vector.load %arg2[%c0, %c0_0, %c0_1] : memref<1x32x128xf32, #tpu.memory_space<vmem>>, vector<1x32x128xf32>
    %1 = vector.shape_cast %0 : vector<1x32x128xf32> to vector<32x128xf32>
    %cst = arith.constant dense<0.000000e+00> : vector<128xf32>
    %2 = vector.multi_reduction <add>, %1, %cst [0] : vector<32x128xf32> to vector<128xf32>
    %3 = vector.shape_cast %2 : vector<128xf32> to vector<1x128xf32>
    %4 = arith.mulf %1, %1 : vector<32x128xf32>
    %cst_2 = arith.constant dense<0.000000e+00> : vector<128xf32>
    %5 = vector.multi_reduction <add>, %4, %cst_2 [0] : vector<32x128xf32> to vector<128xf32>
    %6 = vector.shape_cast %5 : vector<128xf32> to vector<1x128xf32>
    %cst_3 = arith.constant 3.125000e-02 : f32
    %7 = vector.broadcast %cst_3 : f32 to vector<1x128xf32>
    %8 = arith.mulf %3, %7 : vector<1x128xf32>
    %cst_4 = arith.constant 3.125000e-02 : f32
    %9 = vector.broadcast %cst_4 : f32 to vector<1x128xf32>
    %10 = arith.mulf %6, %9 : vector<1x128xf32>
    %11 = arith.mulf %8, %8 : vector<1x128xf32>
    %12 = arith.subf %10, %11 : vector<1x128xf32>
    %cst_5 = arith.constant 0.000000e+00 : f32
    %13 = vector.broadcast %cst_5 : f32 to vector<1x128xf32>
    %14 = arith.maximumf %12, %13 : vector<1x128xf32>
    %15 = vector.broadcast %8 : vector<1x128xf32> to vector<32x128xf32>
    %16 = arith.subf %1, %15 : vector<32x128xf32>
    %cst_6 = arith.constant 9.99999974E-6 : f32
    %17 = vector.broadcast %cst_6 : f32 to vector<1x128xf32>
    %18 = arith.addf %14, %17 : vector<1x128xf32>
    %19 = math.rsqrt %18 : vector<1x128xf32>
    %20 = vector.broadcast %19 : vector<1x128xf32> to vector<32x128xf32>
    %21 = arith.mulf %16, %20 : vector<32x128xf32>
    %c0_7 = arith.constant 0 : index
    %c0_8 = arith.constant 0 : index
    %22 = vector.load %arg3[%c0_7, %c0_8] : memref<32x32xf32, #tpu.memory_space<vmem>>, vector<32x32xf32>
    %cst_9 = arith.constant dense<0.000000e+00> : vector<32x128xf32>
    %23 = tpu.matmul %22, %21, %cst_9 {dimension_numbers = #tpu.dot_dimension_numbers<[1], [0], [0], [1], [0, 0, 1, 1], [], []>} : vector<32x32xf32>, vector<32x128xf32>, vector<32x128xf32> -> vector<32x128xf32>
    %c0_10 = arith.constant 0 : index
    %c0_11 = arith.constant 0 : index
    %24 = vector.load %arg4[%c0_10, %c0_11] : memref<32x1xf32, #tpu.memory_space<vmem>>, vector<32x1xf32>
    %25 = vector.broadcast %24 : vector<32x1xf32> to vector<32x128xf32>
    %26 = arith.addf %23, %25 : vector<32x128xf32>
    %27 = arith.addf %26, %1 : vector<32x128xf32>
    %c0_12 = arith.constant 0 : index
    %c0_13 = arith.constant 0 : index
    %c0_14 = arith.constant 0 : index
    %28 = vector.load %arg5[%c0_12, %c0_13, %c0_14] : memref<1x32x128xf32, #tpu.memory_space<vmem>>, vector<1x32x128xf32>
    %29 = vector.shape_cast %28 : vector<1x32x128xf32> to vector<32x128xf32>
    %30 = vector.shape_cast %27 : vector<32x128xf32> to vector<1x32x128xf32>
    tpu.vector_store %arg5[%c0_12, %c0_13, %c0_14], %30 {strides = array<i32>} : memref<1x32x128xf32, #tpu.memory_space<vmem>>, vector<1x32x128xf32>,
    return
  }
  func.func @transform_0(%arg0: i32, %arg1: i32) -> (i32, i32, i32) {
    %c0_i32 = arith.constant 0 : i32
    %c0_i32_0 = arith.constant 0 : i32
    return %arg0, %c0_i32, %arg1 : i32, i32, i32
  }
  func.func @transform_1(%arg0: i32, %arg1: i32) -> (i32, i32) {
    %c0_i32 = arith.constant 0 : i32
    %c0_i32_0 = arith.constant 0 : i32
    %c0_i32_1 = arith.constant 0 : i32
    return %c0_i32, %c0_i32_0 : i32, i32
  }
  func.func @transform_2(%arg0: i32, %arg1: i32) -> (i32, i32) {
    %c0_i32 = arith.constant 0 : i32
    %c0_i32_0 = arith.constant 0 : i32
    %c0_i32_1 = arith.constant 0 : i32
    return %c0_i32, %c0_i32_0 : i32, i32
  }
  func.func @transform_3(%arg0: i32, %arg1: i32) -> (i32, i32, i32) {
    %c0_i32 = arith.constant 0 : i32
    %c0_i32_0 = arith.constant 0 : i32
    return %arg0, %c0_i32, %arg1 : i32, i32, i32
  }
}

</mosaic_0001>

<llo_original>
// kernel: tpu_custom_call.1
$region0: #{tpu_custom_call.1}
  #allocation0 [shape = 'u32[]', space=smem, size = 0x4, offset = 0x4, fixed_abs, tag = 'smem constant byte address 0x4 - core index']
  #allocation1 [shape = 'u32[72,128]{1,0:T(1,128)}', space=vmem, size = 0x9000, scoped, tag = 'internal scratch']
  %s0 = inlined_call_operand.hbm [shape: f32[2,32,256], index: 0, kind: input, shape index: {}]
  %s1 = inlined_call_operand.vmem [shape: f32[32,32], index: 1, kind: input, shape index: {}]
  %s2 = inlined_call_operand.vmem [shape: f32[32,1], index: 2, kind: input, shape index: {}]
  %s3 = inlined_call_operand.hbm [shape: f32[2,32,256], index: 3, kind: output, shape index: {}]
  %s4 = sld [smem:[#allocation0]]
  $region49: #{tpu_custom_call.1} parent=0
    _
  %s6 = ssub.s32 1, %s4
  %s7 = scalar_select 0, %s6, %s4
  $region1: #{tpu_custom_call.1} parent=0
    #allocation2 [shape = 'u8[32768]{0}', space=vmem, size = 0x8000, scoped, tag = 'input window, operand 0']
    #allocation3 [shape = 's32[2]{0}', space=sflag, size = 0x8, scoped, tag = 'scoped memory for tpu_custom_call.1']
    #allocation4 [shape = 's32[2]{0}', space=sflag, size = 0x8, scoped, tag = 'scoped memory for tpu_custom_call.1']
    #allocation5 [shape = 'u8[32768]{0}', space=vmem, size = 0x8000, scoped, tag = 'output window, operand 0']
    %8 = vsyncpa [#allocation3], 0
    %s9 = scalar_lea.sflag [#allocation3], 1
    %10 = vsyncpa %s9, 0
    %11 = vsyncpa [#allocation4], 0
    %s12 = scalar_lea.sflag [#allocation4], 1
    %13 = vsyncpa %s12, 0
    loop: start=0, step=1, limit=6
    $region2: #{tpu_custom_call.1} parent=1 // loop_pre_header
      _
    $region3: #{tpu_custom_call.1} parent=1 // loop_header
      %s15 = sphi 0, %s19
      %p16 = scmp.ge.s32.totalorder %s15, 6
      %s22 = sphi 0, %s34
      %s23 = sphi 0, %s30
      %s24 = sphi 0, %s22
      %s25 = sphi 0, %s23
      %s26 = sphi 0, %s24
      %s27 = sphi 0, %s25
      %s39 = sphi 0, %s41
      %s42 = sphi 0, %s39
      %s43 = sphi 0, %s42
      %s59 = sphi 0, %s43
      %s63 = sphi 0, %s63
      %s65 = sphi 0, %s63
      %s66 = sphi 0, %s65
      %s80 = sphi 0, %s66
      %s84 = sphi 0, %s84
      %s86 = sphi 0, %s84
      %s87 = sphi 0, %s86
      %s101 = sphi 0, %s87
      %s109 = sphi 0, %s111
      %s112 = sphi 0, %s109
      %s113 = sphi 0, %s112
      %s129 = sphi 0, %s113
    $region4: #{tpu_custom_call.1} parent=1 // loop_header_branch
      %18 = sbr.rel (%p16) target = $region8
    $region5: #{tpu_custom_call.1} parent=1 // loop_body
      %s20 = ssub.s32 %s15, 1
      %s21 = ssub.s32 %s15, 2
      %s28 = sadd.s32 1, %s23
      %p29 = scmp.ge.s32.totalorder %s28, 2
      %s30 = scalar_select %p29, 0, %s28
      %s31 = sadd.s32 1, %s22
      %s32 = scalar_select %p29, %s31, %s22
      %p33 = scmp.ge.s32.totalorder %s32, 2
      %s34 = scalar_select %p33, 0, %s32
      %s35 = ssub.s32 %s22, %s34
      %s36 = ssub.s32 %s23, %s30
      %s37 = sor.u32 %s35, %s36
      %p38 = scmp.eq.s32.totalorder %s37, 0
      %s40 = sadd.s32 %s39, 1
      %s41 = scalar_select %p38, %s39, %s40
      %p44 = pneg %p38
      %p45 = scmp.eq.s32.totalorder %s15, 3
      %p46 = por %p44, %p45
      %p47 = scmp.ne.s32.totalorder %s39, %s42
      %p48 = scmp.eq.s32.totalorder %s15, 0
      %p49 = por %p47, %p48
      %p50 = scmp.ne.s32.totalorder %s39, %s42
      %p51 = scmp.eq.s32.totalorder %s20, 3
      %p52 = por %p50, %p51
      %p53 = scmp.ne.s32.totalorder %s42, %s43
      %p54 = scmp.eq.s32.totalorder %s20, 0
      %p55 = por %p53, %p54
      %p56 = scmp.ne.s32.totalorder %s42, %s43
      %p57 = scmp.eq.s32.totalorder %s21, 3
      %p58 = por %p56, %p57
      %p60 = scmp.ne.s32.totalorder %s43, %s59
      %p61 = scmp.eq.s32.totalorder %s21, 0
      %p62 = por %p60, %p61
      %s64 = sadd.s32 %s63, 1
      %p67 = scmp.eq.s32.totalorder %s15, 3
      %p68 = scmp.ne.s32.totalorder %s63, %s65
      %p69 = scmp.eq.s32.totalorder %s15, 0
      %p70 = por %p68, %p69
      %p71 = scmp.ne.s32.totalorder %s63, %s65
      %p72 = scmp.eq.s32.totalorder %s20, 3
      %p73 = por %p71, %p72
      %p74 = scmp.ne.s32.totalorder %s65, %s66
      %p75 = scmp.eq.s32.totalorder %s20, 0
      %p76 = por %p74, %p75
      %p77 = scmp.ne.s32.totalorder %s65, %s66
      %p78 = scmp.eq.s32.totalorder %s21, 3
      %p79 = por %p77, %p78
      %p81 = scmp.ne.s32.totalorder %s66, %s80
      %p82 = scmp.eq.s32.totalorder %s21, 0
      %p83 = por %p81, %p82
      %s85 = sadd.s32 %s84, 1
      %p88 = scmp.eq.s32.totalorder %s15, 3
      %p89 = scmp.ne.s32.totalorder %s84, %s86
      %p90 = scmp.eq.s32.totalorder %s15, 0
      %p91 = por %p89, %p90
      %p92 = scmp.ne.s32.totalorder %s84, %s86
      %p93 = scmp.eq.s32.totalorder %s20, 3
      %p94 = por %p92, %p93
      %p95 = scmp.ne.s32.totalorder %s86, %s87
      %p96 = scmp.eq.s32.totalorder %s20, 0
      %p97 = por %p95, %p96
      %p98 = scmp.ne.s32.totalorder %s86, %s87
      %p99 = scmp.eq.s32.totalorder %s21, 3
      %p100 = por %p98, %p99
      %p102 = scmp.ne.s32.totalorder %s87, %s101
      %p103 = scmp.eq.s32.totalorder %s21, 0
      %p104 = por %p102, %p103
      %s105 = ssub.s32 %s22, %s34
      %s106 = ssub.s32 %s23, %s30
      %s107 = sor.u32 %s105, %s106
      %p108 = scmp.eq.s32.totalorder %s107, 0
      %s110 = sadd.s32 %s109, 1
      %s111 = scalar_select %p108, %s109, %s110
      %p114 = pneg %p108
      %p115 = scmp.eq.s32.totalorder %s15, 3
      %p116 = por %p114, %p115
      %p117 = scmp.ne.s32.totalorder %s109, %s112
      %p118 = scmp.eq.s32.totalorder %s15, 0
      %p119 = por %p117, %p118
      %p120 = scmp.ne.s32.totalorder %s109, %s112
      %p121 = scmp.eq.s32.totalorder %s20, 3
      %p122 = por %p120, %p121
      %p123 = scmp.ne.s32.totalorder %s112, %s113
      %p124 = scmp.eq.s32.totalorder %s20, 0
      %p125 = por %p123, %p124
      %p126 = scmp.ne.s32.totalorder %s112, %s113
      %p127 = scmp.eq.s32.totalorder %s21, 3
      %p128 = por %p126, %p127
      %p130 = scmp.ne.s32.totalorder %s113, %s129
      %p131 = scmp.eq.s32.totalorder %s21, 0
      %p132 = por %p130, %p131
      %p133 = scmp.le.s32.totalorder 1, %s15
      %p134 = scmp.lt.s32.totalorder %s15, 5
      %p135 = pnand %p133, %p134
      %p136 = pneg %p135
      // Predicated region
      $region9: #{tpu_custom_call.1} parent=5 // pred_check
        _
      $region10: #{tpu_custom_call.1} parent=5 // pred_check_branch
        %138 = sbr.rel (%p135) target = $region12
      $region11: #{tpu_custom_call.1} parent=5 // pred_region
        %s139 = ssub.s32 %s15, 1
        // Predicated region
        $region13: #{tpu_custom_call.1} parent=11 // pred_check
          %p140 = pneg %p76
        $region14: #{tpu_custom_call.1} parent=11 // pred_check_branch
          %142 = sbr.rel (%p140) target = $region16
        $region15: #{tpu_custom_call.1} parent=11 // pred_region
          _
        $region16: #{tpu_custom_call.1} parent=11 // pred_fallthru
          _
        // Predicated region
        $region17: #{tpu_custom_call.1} parent=11 // pred_check
          %p143 = pneg %p97
        $region18: #{tpu_custom_call.1} parent=11 // pred_check_branch
          %145 = sbr.rel (%p143) target = $region20
        $region19: #{tpu_custom_call.1} parent=11 // pred_region
          _
        $region20: #{tpu_custom_call.1} parent=11 // pred_fallthru
          _
      $region12: #{tpu_custom_call.1} parent=5 // pred_fallthru
        _
      %p146 = scmp.lt.s32.totalorder %s15, 4
      // Predicated region
      $region21: #{tpu_custom_call.1} parent=5 // pred_check
        %p147 = pneg %p146
      $region22: #{tpu_custom_call.1} parent=5 // pred_check_branch
        %149 = sbr.rel (%p147) target = $region24
      $region23: #{tpu_custom_call.1} parent=5 // pred_region
        // Predicated region
        $region25: #{tpu_custom_call.1} parent=23 // pred_check
          %p150 = pneg %p49
        $region26: #{tpu_custom_call.1} parent=23 // pred_check_branch
          %152 = sbr.rel (%p150) target = $region28
        $region27: #{tpu_custom_call.1} parent=23 // pred_region
          %s153 = sand.u32 %s39, 1
          %s154 = scalar_lea.sflag [#allocation3], %s153
          %s155 = sand.u32 %s39, 1
          %s156 = smul.addr %s155, 32
          %s157 = scalar_lea.vmem [#allocation2], %s156
          %159 = vsyncadd %s154, 0
          %s160 = smul.addr %s22, 8
          %s161 = sadd.s32 %s23, %s160
          %s162 = smul.addr %s161, 8
          %s163 = scalar_lea.hbm %s0, %s162
          %s164 = sshll.u32 %s163, 4
          %s165 = int_to_ptr.hbm [resolvable:$true] %s164
          %s166 = sshll.u32 %s157, 4
          %s167 = int_to_ptr.vmem [resolvable:$true] %s166
          %172 = dma.hbm_to_vmem [thread:$0]  %s165, 512, %s167, %s154, 256, 128, 8
        $region28: #{tpu_custom_call.1} parent=23 // pred_fallthru
          _
      $region24: #{tpu_custom_call.1} parent=5 // pred_fallthru
        _
      %p173 = scmp.le.s32.totalorder 1, %s15
      %p174 = scmp.lt.s32.totalorder %s15, 5
      %p175 = pnand %p173, %p174
      %p176 = pneg %p175
      // Predicated region
      $region29: #{tpu_custom_call.1} parent=5 // pred_check
        _
      $region30: #{tpu_custom_call.1} parent=5 // pred_check_branch
        %178 = sbr.rel (%p175) target = $region32
      $region31: #{tpu_custom_call.1} parent=5 // pred_region
        %s179 = ssub.s32 %s15, 1
        %s180 = sand.u32 %s42, 1
        %s181 = scalar_lea.sflag [#allocation3], %s180
        %s182 = sand.u32 %s42, 1
        %s183 = smul.addr %s182, 32
        %s184 = scalar_lea.vmem [#allocation2], %s183
        // Predicated region
        $region33: #{tpu_custom_call.1} parent=31 // pred_check
          %p185 = pneg %p55
        $region34: #{tpu_custom_call.1} parent=31 // pred_check_branch
          %187 = sbr.rel (%p185) target = $region36
        $region35: #{tpu_custom_call.1} parent=31 // pred_region
          %189 = dma.done %s181, 512
        $region36: #{tpu_custom_call.1} parent=31 // pred_fallthru
          _
        %s190 = sand.u32 %s42, 1
        %s191 = scalar_lea.sflag [#allocation3], %s190
        %s192 = sand.u32 %s42, 1
        %s193 = smul.addr %s192, 32
        %s194 = scalar_lea.vmem [#allocation2], %s193
        %p195 = pneg %p55
        %p196 = pneg %p52
        %p197 = pneg %p76
        %p198 = pneg %p73
        %p199 = pneg %p97
        %p200 = pneg %p94
        %p201 = pneg %p125
        %p202 = pneg %p122
        %s203 = sand.u32 %s112, 1
        %s204 = scalar_lea.sflag [#allocation4], %s203
        %s205 = sand.u32 %s112, 1
        %s206 = smul.addr %s205, 32
        %s207 = scalar_lea.vmem [#allocation5], %s206
        %v208 = vld [vmem:[%s184] sm:$0xff]
        %v209 = vld [vmem:[%s184 + $0x8] sm:$0xff]
        %v210 = vld [vmem:[%s184 + $0x10] sm:$0xff]
        %v211 = vld [vmem:[%s184 + $0x18] sm:$0xff]
        %v212 = vadd.f32 %v208, %v209
        %v213 = vadd.f32 %v212, %v210
        %v214 = vadd.f32 %v213, %v211
        %v215 = vrot.slane %v214, 4
        %v216 = vadd.f32 %v214, %v215
        %v217 = vrot.slane %v216, 2
        %v218 = vadd.f32 %v216, %v217
        %v219 = vrot.slane %v218, 1
        %v220 = vadd.f32 %v218, %v219
        %v221 = vmul.f32 %v208, %v208
        %v222 = vmul.f32 %v209, %v209
        %v223 = vmul.f32 %v210, %v210
        %v224 = vmul.f32 %v211, %v211
        %v225 = vadd.f32 %v221, %v222
        %v226 = vadd.f32 %v225, %v223
        %v227 = vadd.f32 %v226, %v224
        %v228 = vrot.slane %v227, 4
        %v229 = vadd.f32 %v227, %v228
        %v230 = vrot.slane %v229, 2
        %v231 = vadd.f32 %v229, %v230
        %v232 = vrot.slane %v231, 1
        %v233 = vadd.f32 %v231, %v232
        %v234 = vmul.f32 %v220, 0.03125
        %v235 = vmul.f32 %v233, 0.03125
        %v236 = vmul.f32 %v234, %v234
        %v237 = vsub.f32 %v235, %v236
        %v238 = vmax.f32 %v237, 0.0
        %v239 = vsub.f32 %v208, %v234
        %v240 = vsub.f32 %v209, %v234
        %v241 = vsub.f32 %v210, %v234
        %v242 = vsub.f32 %v211, %v234
        %v243 = vadd.f32 %v238, 1e-05
        %v244 = vrsqrt.pop %v243
        %v245 = vmul.f32 %v244, %v243
        %v246 = vmul.f32 %v245, %v244
        %v247 = vmul.f32 0.5, %v246
        %v248 = vsub.f32 1.5, %v247
        %v249 = vmul.f32 %v244, %v248
        %vm250 = vweird.f32 %v243
        %vm251 = vweird.f32 %v244
        %vm252 = vmor %vm250, %vm251
        %v253 = vsel %vm252, %v244, %v249
        %v254 = vmul.f32 %v239, %v253
        %v255 = vmul.f32 %v240, %v253
        %v256 = vmul.f32 %v241, %v253
        %v257 = vmul.f32 %v242, %v253
        %v258 = vld [vmem:[%s1] sm:$0xff]
        %v259 = vld [vmem:[%s1 + $0x8] sm:$0xff]
        %v260 = vld [vmem:[%s1 + $0x10] sm:$0xff]
        %v261 = vld [vmem:[%s1 + $0x18] sm:$0xff]
        %v262 = vld [vmem:[%s2] sm:$0xff]
        %v263 = vld [vmem:[%s2 + $0x8] sm:$0xff]
        %v264 = vld [vmem:[%s2 + $0x10] sm:$0xff]
        %v265 = vld [vmem:[%s2 + $0x18] sm:$0xff]
        %267 = vset.pattern.permute.xlu0 0
        %268 = vperm.xlu0 %267, %v262
        %v269 = vpop.permute.xlu0 %268
        %272 = vset.pattern.permute.xlu0 0
        %273 = vperm.xlu0 %272, %v263
        %v274 = vpop.permute.xlu0 %273
        %277 = vset.pattern.permute.xlu0 0
        %278 = vperm.xlu0 %277, %v264
        %v279 = vpop.permute.xlu0 %278
        %282 = vset.pattern.permute.xlu0 0
        %283 = vperm.xlu0 %282, %v265
        %v284 = vpop.permute.xlu0 %283
        %vm286 = vcmask 261120
        %v288 = vsel %vm286, %v258, 0
        %v291 = vsel %vm286, %v259, 0
        %v294 = vsel %vm286, %v260, 0
        %v297 = vsel %vm286, %v261, 0
        %299 = vmatpush.msra.mxu0 0.0
        %300 = vmatpush.msra.mxu0 0.0
        %301 = vmatpush.msra.mxu0 0.0
        %302 = vmatpush.msra.mxu0 0.0
        %303 = vmatpush.msra.mxu0 0.0
        %304 = vmatpush.msra.mxu0 0.0
        %305 = vmatpush.msra.mxu0 0.0
        %306 = vmatpush.msra.mxu0 0.0
        %307 = vmatpush.msra.mxu0 0.0
        %308 = vmatpush.msra.mxu0 0.0
        %309 = vmatpush.msra.mxu0 0.0
        %310 = vmatpush.msra.mxu0 0.0
        %311 = vmatpush.msra.mxu0 %v257
        %312 = vmatpush.msra.mxu0 %v256
        %313 = vmatpush.msra.mxu0 %v255
        %314 = vmatpush.msra.mxu0 %v254
        %315 = vmatmul.f32.gmra.mxu0 %v288
        %v316 = vpop.f32.mrf.mxu0
        %v317 = vadd.f32 %v269, %v316
        %318 = vmatmul.f32.gmra.mxu0 %v291
        %v319 = vpop.f32.mrf.mxu0
        %v320 = vadd.f32 %v274, %v319
        %321 = vmatmul.f32.gmra.mxu0 %v294
        %v322 = vpop.f32.mrf.mxu0
        %v323 = vadd.f32 %v279, %v322
        %324 = vmatmul.f32.gmra.mxu0 %v297
        %v325 = vpop.f32.mrf.mxu0
        %v326 = vadd.f32 %v284, %v325
        %327 = vdwg.mxu0
        %v328 = vadd.f32 %v317, %v208
        %v329 = vadd.f32 %v320, %v209
        %v330 = vadd.f32 %v323, %v210
        %v331 = vadd.f32 %v326, %v211
        %332 = vst [vmem:[%s207] sm:$0xff] %v328
        %333 = vst [vmem:[%s207 + $0x8] sm:$0xff] %v329
        %334 = vst [vmem:[%s207 + $0x10] sm:$0xff] %v330
        %335 = vst [vmem:[%s207 + $0x18] sm:$0xff] %v331
        %s336 = sand.u32 %s112, 1
        %s337 = scalar_lea.sflag [#allocation4], %s336
        %s338 = sand.u32 %s112, 1
        %s339 = smul.addr %s338, 32
        %s340 = scalar_lea.vmem [#allocation5], %s339
        // Predicated region
        $region37: #{tpu_custom_call.1} parent=31 // pred_check
          %p341 = pneg %p122
        $region38: #{tpu_custom_call.1} parent=31 // pred_check_branch
          %343 = sbr.rel (%p341) target = $region40
        $region39: #{tpu_custom_call.1} parent=31 // pred_region
          %345 = vsyncadd %s337, 0
          %s346 = smul.addr %s24, 8
          %s347 = sadd.s32 %s25, %s346
          %s348 = smul.addr %s347, 8
          %s349 = scalar_lea.hbm %s3, %s348
          %s350 = sshll.u32 %s340, 4
          %s351 = int_to_ptr.vmem [resolvable:$true] %s350
          %s352 = sshll.u32 %s349, 4
          %s353 = int_to_ptr.hbm [resolvable:$true] %s352
          %358 = dma.vmem_to_hbm [thread:$0]  %s351, 512, %s353, %s337, 128, 256, 8
        $region40: #{tpu_custom_call.1} parent=31 // pred_fallthru
          _
      $region32: #{tpu_custom_call.1} parent=5 // pred_fallthru
        _
      %p359 = scmp.le.s32.totalorder 2, %s15
      // Predicated region
      $region41: #{tpu_custom_call.1} parent=5 // pred_check
        %p360 = pneg %p359
      $region42: #{tpu_custom_call.1} parent=5 // pred_check_branch
        %362 = sbr.rel (%p360) target = $region44
      $region43: #{tpu_custom_call.1} parent=5 // pred_region
        %s363 = ssub.s32 %s15, 2
        // Predicated region
        $region45: #{tpu_custom_call.1} parent=43 // pred_check
          %p364 = pneg %p128
        $region46: #{tpu_custom_call.1} parent=43 // pred_check_branch
          %366 = sbr.rel (%p364) target = $region48
        $region47: #{tpu_custom_call.1} parent=43 // pred_region
          %s367 = sand.u32 %s113, 1
          %s368 = scalar_lea.sflag [#allocation4], %s367
          %s369 = sand.u32 %s113, 1
          %s370 = smul.addr %s369, 32
          %s371 = scalar_lea.vmem [#allocation5], %s370
          %373 = dma.done %s368, 512
        $region48: #{tpu_custom_call.1} parent=43 // pred_fallthru
          _
      $region44: #{tpu_custom_call.1} parent=5 // pred_fallthru
        _
    $region6: #{tpu_custom_call.1} parent=1 // loop_footer
      %s19 = sadd.s32 1, %s15
    $region7: #{tpu_custom_call.1} parent=1 // loop_footer_branch
      %14 = sbr.rel target = $region3
    $region8: #{tpu_custom_call.1} parent=1 // loop_exit
      _
    %374 = vsyncpa [#allocation3], 1
    %s375 = scalar_lea.sflag [#allocation3], 1
    %376 = vsyncpa %s375, 1
    %377 = vsyncpa [#allocation4], 1
    %s378 = scalar_lea.sflag [#allocation4], 1
    %379 = vsyncpa %s378, 1

</llo_original>
